<compile_context>
chip_gen: v7x
topology: tpu7x:2x2x1
jax: 0.10.0
libtpu: 0.0.40
codegen_flags: <defaults>
</compile_context>

<pallas_src>
import functools

import jax
import jax.numpy as jnp
from jax.experimental import pallas as pl
from jax.experimental.pallas import tpu as pltpu

IN_FEATURES = 3 * 9 * 9          # 243
FUSED_IN = 2 * IN_FEATURES       # 486


# ---------------------------------------------------------------------------
# Kernel
# ---------------------------------------------------------------------------
def siamese_kernel(
    x_ref,                       # (TB, 486) bf16  -- [x1 | x2]
    w1_ref, b1_ref,              # (486, 100) bf16, (1, 100) f32  (blockdiag of branch layer 1)
    w2_ref, b2_ref,              # (100, 100) bf16, (1, 100) f32  (blockdiag of branch layer 2)
    wf1_ref, bf1_ref,            # (100, 75)  bf16, (1, 75)  f32
    wf2_ref, bf2_ref,            # (75, 50)   bf16, (1, 50)  f32
    wf3_ref, bf3_ref,            # (50, 25)   bf16, (1, 25)  f32
    wf4_ref, bf4_ref,            # (1, 25)    f32,  (1, 1)   f32   (final layer as a row)
    out_ref,                     # (TB, 1)    f32
):
    def dot_bias_relu(x_bf16, w_ref, b_ref):
        y = jnp.dot(x_bf16, w_ref[...], preferred_element_type=jnp.float32)
        return jnp.maximum(y + b_ref[...], 0.0)

    h = dot_bias_relu(x_ref[...], w1_ref, b1_ref)                    # (TB, 100)  both branches, layer 1
    h = dot_bias_relu(h.astype(jnp.bfloat16), w2_ref, b2_ref)        # (TB, 100)  both branches, layer 2
    h = dot_bias_relu(h.astype(jnp.bfloat16), wf1_ref, bf1_ref)      # (TB, 75)   fc[0] (fused concat)
    h = dot_bias_relu(h.astype(jnp.bfloat16), wf2_ref, bf2_ref)      # (TB, 50)   fc[2]
    h = dot_bias_relu(h.astype(jnp.bfloat16), wf3_ref, bf3_ref)      # (TB, 25)   fc[4]
    # fc[6]: Linear(25, 1) done on the VPU + lane-reduce (avoids a 1-lane MXU dot).
    out = jnp.sum(h * wf4_ref[...], axis=-1, keepdims=True) + bf4_ref[...]
    out_ref[...] = out.astype(out_ref.dtype)


# ---------------------------------------------------------------------------
# Wrapper
# ---------------------------------------------------------------------------
@functools.partial(jax.jit, static_argnames=("tb",))
def siamese_forward(input1, input2, kparams, *, tb=512):
    """input1, input2: (B, 3, 9, 9).  Returns (B, 1) float32."""
    B = input1.shape[0]
    x1 = input1.astype(jnp.float32).reshape(B, IN_FEATURES)
    x2 = input2.astype(jnp.float32).reshape(B, IN_FEATURES)
    # Fused branch input: one DMA stream, bf16 to halve HBM bytes.
    x = jnp.concatenate([x1, x2], axis=-1).astype(jnp.bfloat16)      # (B, 486)

    # Batch tile: multiple of 8, capped for tiny batches.
    TB = tb if B >= tb else max(8, ((B + 7) // 8) * 8)
    B_pad = pl.cdiv(B, TB) * TB
    if B_pad != B:
        x = jnp.pad(x, ((0, B_pad - B), (0, 0)))

    grid = (B_pad // TB,)
    row_map = lambda i: (i, 0)       # batch-tiled operands
    const_map = lambda i: (0, 0)     # VMEM-resident params (same block every step)

    def pspec(arr):
        return pl.BlockSpec(arr.shape, const_map)

    p = kparams
    param_args = (
        p["w1"], p["b1"], p["w2"], p["b2"],
        p["wf1"], p["bf1"], p["wf2"], p["bf2"],
        p["wf3"], p["bf3"], p["wf4"], p["bf4"],
    )

    out = pl.pallas_call(
        siamese_kernel,
        out_shape=jax.ShapeDtypeStruct((B_pad, 1), jnp.float32),
        grid=grid,
        in_specs=[pl.BlockSpec((TB, FUSED_IN), row_map)]
        + [pspec(a) for a in param_args],
        out_specs=pl.BlockSpec((TB, 1), row_map),
        compiler_params=pltpu.CompilerParams(
            dimension_semantics=("parallel",),
        ),
    )(x, *param_args)
    return out[:B]


# ---------------------------------------------------------------------------
# Parameter init / packing
# ---------------------------------------------------------------------------
def _uniform(key, shape, bound):
    return jax.random.uniform(key, shape, dtype=jnp.float32, minval=-bound, maxval=bound)


def init_params(key):
    """PyTorch-style U(-1/sqrt(fan_in), 1/sqrt(fan_in)) init.

    Weights are stored transposed as (in_features, out_features), f32."""
    keys = jax.random.split(key, 20)
    k = iter(keys)

    def linear(kw, kb, fan_in, fan_out):
        bound = 1.0 / jnp.sqrt(jnp.float32(fan_in))
        return _uniform(kw, (fan_in, fan_out), bound), _uniform(kb, (1, fan_out), bound)

    raw = {}
    raw["w1a"], raw["b1a"] = linear(next(k), next(k), IN_FEATURES, 50)   # cnn1.0
    raw["w1b"], raw["b1b"] = linear(next(k), next(k), 50, 50)            # cnn1.2
    raw["w2a"], raw["b2a"] = linear(next(k), next(k), IN_FEATURES, 50)   # cnn2.0
    raw["w2b"], raw["b2b"] = linear(next(k), next(k), 50, 50)            # cnn2.2
    raw["wf1"], raw["bf1"] = linear(next(k), next(k), 100, 75)           # fc.0
    raw["wf2"], raw["bf2"] = linear(next(k), next(k), 75, 50)            # fc.2
    raw["wf3"], raw["bf3"] = linear(next(k), next(k), 50, 25)            # fc.4
    raw["wf4"], raw["bf4"] = linear(next(k), next(k), 25, 1)             # fc.6
    return raw


def pack_params(raw):
    """Block-diagonal branch fusion + bf16 matmul weights (biases stay f32)."""

    def blockdiag(a, b):
        m1, n1 = a.shape
        m2, n2 = b.shape
        top = jnp.concatenate([a, jnp.zeros((m1, n2), a.dtype)], axis=1)
        bot = jnp.concatenate([jnp.zeros((m2, n1), b.dtype), b], axis=1)
        return jnp.concatenate([top, bot], axis=0)

    p = {}
    p["w1"] = blockdiag(raw["w1a"], raw["w2a"]).astype(jnp.bfloat16)     # (486, 100)
    p["b1"] = jnp.concatenate([raw["b1a"], raw["b2a"]], axis=-1)         # (1, 100)
    p["w2"] = blockdiag(raw["w1b"], raw["w2b"]).astype(jnp.bfloat16)     # (100, 100)
    p["b2"] = jnp.concatenate([raw["b1b"], raw["b2b"]], axis=-1)         # (1, 100)
    p["wf1"] = raw["wf1"].astype(jnp.bfloat16)                           # (100, 75)
    p["bf1"] = raw["bf1"]
    p["wf2"] = raw["wf2"].astype(jnp.bfloat16)                           # (75, 50)
    p["bf2"] = raw["bf2"]
    p["wf3"] = raw["wf3"].astype(jnp.bfloat16)                           # (50, 25)
    p["bf3"] = raw["bf3"]
    p["wf4"] = raw["wf4"].reshape(1, 25)                                 # (1, 25) f32 row
    p["bf4"] = raw["bf4"]                                                # (1, 1)
    return p


# ---------------------------------------------------------------------------
# Pure-JAX reference (exact PyTorch semantics, f32)
# ---------------------------------------------------------------------------
def _reference_forward(input1, input2, raw):
    B = input1.shape[0]
    x1 = input1.astype(jnp.float32).reshape(B, IN_FEATURES)
    x2 = input2.astype(jnp.float32).reshape(B, IN_FEATURES)
    relu = lambda v: jnp.maximum(v, 0.0)
    o1 = relu(relu(x1 @ raw["w1a"] + raw["b1a"]) @ raw["w1b"] + raw["b1b"])
    o2 = relu(relu(x2 @ raw["w2a"] + raw["b2a"]) @ raw["w2b"] + raw["b2b"])
    combined = jnp.concatenate([o1, o2], axis=1)   # unsqueeze/view round-trip is a no-op
    h = relu(combined @ raw["wf1"] + raw["bf1"])
    h = relu(h @ raw["wf2"] + raw["bf2"])
    h = relu(h @ raw["wf3"] + raw["bf3"])
    return h @ raw["wf4"] + raw["bf4"]


if __name__ == "__main__":
    key = jax.random.PRNGKey(0)
    k_params, k_x1, k_x2 = jax.random.split(key, 3)

    raw_params = init_params(k_params)
    kparams = pack_params(raw_params)

    B = 8
    input1 = jax.random.normal(k_x1, (B, 3, 9, 9), dtype=jnp.float32)
    input2 = jax.random.normal(k_x2, (B, 3, 9, 9), dtype=jnp.float32)

    out = siamese_forward(input1, input2, kparams)
    out = jax.block_until_ready(out)

    ref = _reference_forward(input1, input2, raw_params)
    assert out.shape == (B, 1)
    # bf16 matmul path vs f32 reference -> loose-ish tolerance.
    assert jnp.allclose(out, ref, atol=3e-2, rtol=3e-2), "mismatch vs reference"

    print("KERNEL_OK")
</pallas_src>

<mosaic_0001>
module attributes {stable_mosaic.version = 11 : i64} {
  func.func @siamese_kernel(%arg0: i32, %arg1: memref<8x486xbf16, #tpu.memory_space<vmem>>, %arg2: memref<486x100xbf16, #tpu.memory_space<vmem>>, %arg3: memref<1x100xf32, #tpu.memory_space<vmem>>, %arg4: memref<100x100xbf16, #tpu.memory_space<vmem>>, %arg5: memref<1x100xf32, #tpu.memory_space<vmem>>, %arg6: memref<100x75xbf16, #tpu.memory_space<vmem>>, %arg7: memref<1x75xf32, #tpu.memory_space<vmem>>, %arg8: memref<75x50xbf16, #tpu.memory_space<vmem>>, %arg9: memref<1x50xf32, #tpu.memory_space<vmem>>, %arg10: memref<50x25xbf16, #tpu.memory_space<vmem>>, %arg11: memref<1x25xf32, #tpu.memory_space<vmem>>, %arg12: memref<1x25xf32, #tpu.memory_space<vmem>>, %arg13: memref<1x1xf32, #tpu.memory_space<vmem>>, %arg14: memref<8x1xf32, #tpu.memory_space<vmem>>) attributes {dimension_semantics = [#tpu.dimension_semantics<parallel>], iteration_bounds = array<i64: 1>, scalar_prefetch = 0 : i64, scratch_operands = 0 : i64, tpu.core_type = #tpu.core_type<tc>, window_params = [{transform_indices = @transform_0, window_bounds = array<i64: 8, 486>}, {pipeline_mode = #tpu.pipeline_mode<synchronous>, transform_indices = @transform_1, window_bounds = array<i64: 486, 100>}, {pipeline_mode = #tpu.pipeline_mode<synchronous>, transform_indices = @transform_2, window_bounds = array<i64: 1, 100>}, {pipeline_mode = #tpu.pipeline_mode<synchronous>, transform_indices = @transform_3, window_bounds = array<i64: 100, 100>}, {pipeline_mode = #tpu.pipeline_mode<synchronous>, transform_indices = @transform_4, window_bounds = array<i64: 1, 100>}, {pipeline_mode = #tpu.pipeline_mode<synchronous>, transform_indices = @transform_5, window_bounds = array<i64: 100, 75>}, {pipeline_mode = #tpu.pipeline_mode<synchronous>, transform_indices = @transform_6, window_bounds = array<i64: 1, 75>}, {pipeline_mode = #tpu.pipeline_mode<synchronous>, transform_indices = @transform_7, window_bounds = array<i64: 75, 50>}, {pipeline_mode = #tpu.pipeline_mode<synchronous>, transform_indices = @transform_8, window_bounds = array<i64: 1, 50>}, {pipeline_mode = #tpu.pipeline_mode<synchronous>, transform_indices = @transform_9, window_bounds = array<i64: 50, 25>}, {pipeline_mode = #tpu.pipeline_mode<synchronous>, transform_indices = @transform_10, window_bounds = array<i64: 1, 25>}, {pipeline_mode = #tpu.pipeline_mode<synchronous>, transform_indices = @transform_11, window_bounds = array<i64: 1, 25>}, {pipeline_mode = #tpu.pipeline_mode<synchronous>, transform_indices = @transform_12, window_bounds = array<i64: 1, 1>}, {transform_indices = @transform_13, window_bounds = array<i64: 8, 1>}]} {
    %c0 = arith.constant 0 : index
    %c0_0 = arith.constant 0 : index
    %0 = vector.load %arg1[%c0, %c0_0] : memref<8x486xbf16, #tpu.memory_space<vmem>>, vector<8x486xbf16>
    %c0_1 = arith.constant 0 : index
    %c0_2 = arith.constant 0 : index
    %1 = vector.load %arg2[%c0_1, %c0_2] : memref<486x100xbf16, #tpu.memory_space<vmem>>, vector<486x100xbf16>
    %cst = arith.constant dense<0.000000e+00> : vector<8x100xf32>
    %2 = tpu.matmul %0, %1, %cst {dimension_numbers = #tpu.dot_dimension_numbers<[1], [0], [0], [1], [0, 0, 1, 1], [], []>} : vector<8x486xbf16>, vector<486x100xbf16>, vector<8x100xf32> -> vector<8x100xf32>
    %c0_3 = arith.constant 0 : index
    %c0_4 = arith.constant 0 : index
    %3 = vector.load %arg3[%c0_3, %c0_4] : memref<1x100xf32, #tpu.memory_space<vmem>>, vector<1x100xf32>
    %4 = vector.broadcast %3 : vector<1x100xf32> to vector<8x100xf32>
    %5 = arith.addf %2, %4 : vector<8x100xf32>
    %cst_5 = arith.constant 0.000000e+00 : f32
    %6 = vector.broadcast %cst_5 : f32 to vector<8x100xf32>
    %7 = arith.maximumf %5, %6 : vector<8x100xf32>
    %8 = arith.truncf %7 : vector<8x100xf32> to vector<8x100xbf16>
    %c0_6 = arith.constant 0 : index
    %c0_7 = arith.constant 0 : index
    %9 = vector.load %arg4[%c0_6, %c0_7] : memref<100x100xbf16, #tpu.memory_space<vmem>>, vector<100x100xbf16>
    %cst_8 = arith.constant dense<0.000000e+00> : vector<8x100xf32>
    %10 = tpu.matmul %8, %9, %cst_8 {dimension_numbers = #tpu.dot_dimension_numbers<[1], [0], [0], [1], [0, 0, 1, 1], [], []>} : vector<8x100xbf16>, vector<100x100xbf16>, vector<8x100xf32> -> vector<8x100xf32>
    %c0_9 = arith.constant 0 : index
    %c0_10 = arith.constant 0 : index
    %11 = vector.load %arg5[%c0_9, %c0_10] : memref<1x100xf32, #tpu.memory_space<vmem>>, vector<1x100xf32>
    %12 = vector.broadcast %11 : vector<1x100xf32> to vector<8x100xf32>
    %13 = arith.addf %10, %12 : vector<8x100xf32>
    %cst_11 = arith.constant 0.000000e+00 : f32
    %14 = vector.broadcast %cst_11 : f32 to vector<8x100xf32>
    %15 = arith.maximumf %13, %14 : vector<8x100xf32>
    %16 = arith.truncf %15 : vector<8x100xf32> to vector<8x100xbf16>
    %c0_12 = arith.constant 0 : index
    %c0_13 = arith.constant 0 : index
    %17 = vector.load %arg6[%c0_12, %c0_13] : memref<100x75xbf16, #tpu.memory_space<vmem>>, vector<100x75xbf16>
    %cst_14 = arith.constant dense<0.000000e+00> : vector<8x75xf32>
    %18 = tpu.matmul %16, %17, %cst_14 {dimension_numbers = #tpu.dot_dimension_numbers<[1], [0], [0], [1], [0, 0, 1, 1], [], []>} : vector<8x100xbf16>, vector<100x75xbf16>, vector<8x75xf32> -> vector<8x75xf32>
    %c0_15 = arith.constant 0 : index
    %c0_16 = arith.constant 0 : index
    %19 = vector.load %arg7[%c0_15, %c0_16] : memref<1x75xf32, #tpu.memory_space<vmem>>, vector<1x75xf32>
    %20 = vector.broadcast %19 : vector<1x75xf32> to vector<8x75xf32>
    %21 = arith.addf %18, %20 : vector<8x75xf32>
    %cst_17 = arith.constant 0.000000e+00 : f32
    %22 = vector.broadcast %cst_17 : f32 to vector<8x75xf32>
    %23 = arith.maximumf %21, %22 : vector<8x75xf32>
    %24 = arith.truncf %23 : vector<8x75xf32> to vector<8x75xbf16>
    %c0_18 = arith.constant 0 : index
    %c0_19 = arith.constant 0 : index
    %25 = vector.load %arg8[%c0_18, %c0_19] : memref<75x50xbf16, #tpu.memory_space<vmem>>, vector<75x50xbf16>
    %cst_20 = arith.constant dense<0.000000e+00> : vector<8x50xf32>
    %26 = tpu.matmul %24, %25, %cst_20 {dimension_numbers = #tpu.dot_dimension_numbers<[1], [0], [0], [1], [0, 0, 1, 1], [], []>} : vector<8x75xbf16>, vector<75x50xbf16>, vector<8x50xf32> -> vector<8x50xf32>
    %c0_21 = arith.constant 0 : index
    %c0_22 = arith.constant 0 : index
    %27 = vector.load %arg9[%c0_21, %c0_22] : memref<1x50xf32, #tpu.memory_space<vmem>>, vector<1x50xf32>
    %28 = vector.broadcast %27 : vector<1x50xf32> to vector<8x50xf32>
    %29 = arith.addf %26, %28 : vector<8x50xf32>
    %cst_23 = arith.constant 0.000000e+00 : f32
    %30 = vector.broadcast %cst_23 : f32 to vector<8x50xf32>
    %31 = arith.maximumf %29, %30 : vector<8x50xf32>
    %32 = arith.truncf %31 : vector<8x50xf32> to vector<8x50xbf16>
    %c0_24 = arith.constant 0 : index
    %c0_25 = arith.constant 0 : index
    %33 = vector.load %arg10[%c0_24, %c0_25] : memref<50x25xbf16, #tpu.memory_space<vmem>>, vector<50x25xbf16>
    %cst_26 = arith.constant dense<0.000000e+00> : vector<8x25xf32>
    %34 = tpu.matmul %32, %33, %cst_26 {dimension_numbers = #tpu.dot_dimension_numbers<[1], [0], [0], [1], [0, 0, 1, 1], [], []>} : vector<8x50xbf16>, vector<50x25xbf16>, vector<8x25xf32> -> vector<8x25xf32>
    %c0_27 = arith.constant 0 : index
    %c0_28 = arith.constant 0 : index
    %35 = vector.load %arg11[%c0_27, %c0_28] : memref<1x25xf32, #tpu.memory_space<vmem>>, vector<1x25xf32>
    %36 = vector.broadcast %35 : vector<1x25xf32> to vector<8x25xf32>
    %37 = arith.addf %34, %36 : vector<8x25xf32>
    %cst_29 = arith.constant 0.000000e+00 : f32
    %38 = vector.broadcast %cst_29 : f32 to vector<8x25xf32>
    %39 = arith.maximumf %37, %38 : vector<8x25xf32>
    %c0_30 = arith.constant 0 : index
    %c0_31 = arith.constant 0 : index
    %40 = vector.load %arg12[%c0_30, %c0_31] : memref<1x25xf32, #tpu.memory_space<vmem>>, vector<1x25xf32>
    %41 = vector.broadcast %40 : vector<1x25xf32> to vector<8x25xf32>
    %42 = arith.mulf %39, %41 : vector<8x25xf32>
    %cst_32 = arith.constant dense<0.000000e+00> : vector<8xf32>
    %43 = vector.multi_reduction <add>, %42, %cst_32 [1] : vector<8x25xf32> to vector<8xf32>
    %44 = vector.shape_cast %43 : vector<8xf32> to vector<8x1xf32>
    %c0_33 = arith.constant 0 : index
    %c0_34 = arith.constant 0 : index
    %45 = vector.load %arg13[%c0_33, %c0_34] : memref<1x1xf32, #tpu.memory_space<vmem>>, vector<1x1xf32>
    %46 = vector.broadcast %45 : vector<1x1xf32> to vector<8x1xf32>
    %47 = arith.addf %44, %46 : vector<8x1xf32>
    %c0_35 = arith.constant 0 : index
    %c0_36 = arith.constant 0 : index
    %48 = vector.load %arg14[%c0_35, %c0_36] : memref<8x1xf32, #tpu.memory_space<vmem>>, vector<8x1xf32>
    tpu.vector_store %arg14[%c0_35, %c0_36], %47 {strides = array<i32>} : memref<8x1xf32, #tpu.memory_space<vmem>>, vector<8x1xf32>,
    return
  }
  func.func @transform_0(%arg0: i32) -> (i32, i32) {
    %c0_i32 = arith.constant 0 : i32
    %c0_i32_0 = arith.constant 0 : i32
    return %arg0, %c0_i32 : i32, i32
  }
  func.func @transform_1(%arg0: i32) -> (i32, i32) {
    %c0_i32 = arith.constant 0 : i32
    %c0_i32_0 = arith.constant 0 : i32
    %c0_i32_1 = arith.constant 0 : i32
    return %c0_i32, %c0_i32_0 : i32, i32
  }
  func.func @transform_2(%arg0: i32) -> (i32, i32) {
    %c0_i32 = arith.constant 0 : i32
    %c0_i32_0 = arith.constant 0 : i32
    %c0_i32_1 = arith.constant 0 : i32
    return %c0_i32, %c0_i32_0 : i32, i32
  }
  func.func @transform_3(%arg0: i32) -> (i32, i32) {
    %c0_i32 = arith.constant 0 : i32
    %c0_i32_0 = arith.constant 0 : i32
    %c0_i32_1 = arith.constant 0 : i32
    return %c0_i32, %c0_i32_0 : i32, i32
  }
  func.func @transform_4(%arg0: i32) -> (i32, i32) {
    %c0_i32 = arith.constant 0 : i32
    %c0_i32_0 = arith.constant 0 : i32
    %c0_i32_1 = arith.constant 0 : i32
    return %c0_i32, %c0_i32_0 : i32, i32
  }
  func.func @transform_5(%arg0: i32) -> (i32, i32) {
    %c0_i32 = arith.constant 0 : i32
    %c0_i32_0 = arith.constant 0 : i32
    %c0_i32_1 = arith.constant 0 : i32
    return %c0_i32, %c0_i32_0 : i32, i32
  }
  func.func @transform_6(%arg0: i32) -> (i32, i32) {
    %c0_i32 = arith.constant 0 : i32
    %c0_i32_0 = arith.constant 0 : i32
    %c0_i32_1 = arith.constant 0 : i32
    return %c0_i32, %c0_i32_0 : i32, i32
  }
  func.func @transform_7(%arg0: i32) -> (i32, i32) {
    %c0_i32 = arith.constant 0 : i32
    %c0_i32_0 = arith.constant 0 : i32
    %c0_i32_1 = arith.constant 0 : i32
    return %c0_i32, %c0_i32_0 : i32, i32
  }
  func.func @transform_8(%arg0: i32) -> (i32, i32) {
    %c0_i32 = arith.constant 0 : i32
    %c0_i32_0 = arith.constant 0 : i32
    %c0_i32_1 = arith.constant 0 : i32
    return %c0_i32, %c0_i32_0 : i32, i32
  }
  func.func @transform_9(%arg0: i32) -> (i32, i32) {
    %c0_i32 = arith.constant 0 : i32
    %c0_i32_0 = arith.constant 0 : i32
    %c0_i32_1 = arith.constant 0 : i32
    return %c0_i32, %c0_i32_0 : i32, i32
  }
  func.func @transform_10(%arg0: i32) -> (i32, i32) {
    %c0_i32 = arith.constant 0 : i32
    %c0_i32_0 = arith.constant 0 : i32
    %c0_i32_1 = arith.constant 0 : i32
    return %c0_i32, %c0_i32_0 : i32, i32
  }
  func.func @transform_11(%arg0: i32) -> (i32, i32) {
    %c0_i32 = arith.constant 0 : i32
    %c0_i32_0 = arith.constant 0 : i32
    %c0_i32_1 = arith.constant 0 : i32
    return %c0_i32, %c0_i32_0 : i32, i32
  }
  func.func @transform_12(%arg0: i32) -> (i32, i32) {
    %c0_i32 = arith.constant 0 : i32
    %c0_i32_0 = arith.constant 0 : i32
    %c0_i32_1 = arith.constant 0 : i32
    return %c0_i32, %c0_i32_0 : i32, i32
  }
  func.func @transform_13(%arg0: i32) -> (i32, i32) {
    %c0_i32 = arith.constant 0 : i32
    %c0_i32_0 = arith.constant 0 : i32
    return %arg0, %c0_i32 : i32, i32
  }
}

</mosaic_0001>

<llo_original>
// kernel: siamese_forward.1
$region0: #{siamese_forward.1}
  #allocation0 [shape = 'u32[]', space=smem, size = 0x4, offset = 0x4, fixed_abs, tag = 'smem constant byte address 0x4 - core index']
  #allocation1 [shape = 'u32[144,128]{1,0:T(1,128)}', space=vmem, size = 0x12000, scoped, tag = 'internal scratch']
  #allocation2 [shape = 'f32[1,1]{1,0:T(1,128)S(1)}', space=vmem, size = 0x200, scoped, tag = 'scoped memory for siamese_forward.1']
  %s0 = inlined_call_operand.vmem [shape: bf16[8,486], index: 0, kind: input, shape index: {}]
  %s1 = inlined_call_operand.vmem [shape: bf16[486,100], index: 1, kind: input, shape index: {}]
  %s2 = inlined_call_operand.vmem [shape: f32[1,100], index: 2, kind: input, shape index: {}]
  %s3 = inlined_call_operand.vmem [shape: bf16[100,100], index: 3, kind: input, shape index: {}]
  %s4 = inlined_call_operand.vmem [shape: f32[1,100], index: 4, kind: input, shape index: {}]
  %s5 = inlined_call_operand.vmem [shape: bf16[100,75], index: 5, kind: input, shape index: {}]
  %s6 = inlined_call_operand.vmem [shape: f32[1,75], index: 6, kind: input, shape index: {}]
  %s7 = inlined_call_operand.vmem [shape: bf16[75,50], index: 7, kind: input, shape index: {}]
  %s8 = inlined_call_operand.vmem [shape: f32[1,50], index: 8, kind: input, shape index: {}]
  %s9 = inlined_call_operand.vmem [shape: bf16[50,25], index: 9, kind: input, shape index: {}]
  %s10 = inlined_call_operand.vmem [shape: f32[1,25], index: 10, kind: input, shape index: {}]
  %s11 = inlined_call_operand.vmem [shape: f32[1,25], index: 11, kind: input, shape index: {}]
  %s12 = inlined_call_operand.<no memory space> [shape: f32[1,1], index: 12, kind: input, shape index: {}]
  %s13 = inlined_call_operand.vmem [shape: f32[8,1], index: 13, kind: output, shape index: {}]
  %s14 = sld [smem:[#allocation0]]
  $region62: #{siamese_forward.1} parent=0
    _
  %s16 = ssub.s32 1, %s14
  %s17 = scalar_select 0, %s16, %s14
  %v18 = vstv %s12
  %19 = vst [vmem:[#allocation2] sm:$0x1] %v18
  // Predicated region
  $region2: #{siamese_forward.1} parent=0 // pred_check
    _
  $region3: #{siamese_forward.1} parent=0 // pred_check_branch
    %21 = sbr.rel (0) target = $region5
  $region4: #{siamese_forward.1} parent=0 // pred_region
    _
  $region5: #{siamese_forward.1} parent=0 // pred_fallthru
    _
  // Predicated region
  $region6: #{siamese_forward.1} parent=0 // pred_check
    _
  $region7: #{siamese_forward.1} parent=0 // pred_check_branch
    %23 = sbr.rel (0) target = $region9
  $region8: #{siamese_forward.1} parent=0 // pred_region
    _
  $region9: #{siamese_forward.1} parent=0 // pred_fallthru
    _
  // Predicated region
  $region10: #{siamese_forward.1} parent=0 // pred_check
    _
  $region11: #{siamese_forward.1} parent=0 // pred_check_branch
    %25 = sbr.rel (0) target = $region13
  $region12: #{siamese_forward.1} parent=0 // pred_region
    _
  $region13: #{siamese_forward.1} parent=0 // pred_fallthru
    _
  // Predicated region
  $region14: #{siamese_forward.1} parent=0 // pred_check
    _
  $region15: #{siamese_forward.1} parent=0 // pred_check_branch
    %27 = sbr.rel (0) target = $region17
  $region16: #{siamese_forward.1} parent=0 // pred_region
    _
  $region17: #{siamese_forward.1} parent=0 // pred_fallthru
    _
  // Predicated region
  $region18: #{siamese_forward.1} parent=0 // pred_check
    _
  $region19: #{siamese_forward.1} parent=0 // pred_check_branch
    %29 = sbr.rel (0) target = $region21
  $region20: #{siamese_forward.1} parent=0 // pred_region
    _
  $region21: #{siamese_forward.1} parent=0 // pred_fallthru
    _
  // Predicated region
  $region22: #{siamese_forward.1} parent=0 // pred_check
    _
  $region23: #{siamese_forward.1} parent=0 // pred_check_branch
    %31 = sbr.rel (0) target = $region25
  $region24: #{siamese_forward.1} parent=0 // pred_region
    _
  $region25: #{siamese_forward.1} parent=0 // pred_fallthru
    _
  // Predicated region
  $region26: #{siamese_forward.1} parent=0 // pred_check
    _
  $region27: #{siamese_forward.1} parent=0 // pred_check_branch
    %33 = sbr.rel (0) target = $region29
  $region28: #{siamese_forward.1} parent=0 // pred_region
    _
  $region29: #{siamese_forward.1} parent=0 // pred_fallthru
    _
  // Predicated region
  $region30: #{siamese_forward.1} parent=0 // pred_check
    _
  $region31: #{siamese_forward.1} parent=0 // pred_check_branch
    %35 = sbr.rel (0) target = $region33
  $region32: #{siamese_forward.1} parent=0 // pred_region
    _
  $region33: #{siamese_forward.1} parent=0 // pred_fallthru
    _
  // Predicated region
  $region34: #{siamese_forward.1} parent=0 // pred_check
    _
  $region35: #{siamese_forward.1} parent=0 // pred_check_branch
    %37 = sbr.rel (0) target = $region37
  $region36: #{siamese_forward.1} parent=0 // pred_region
    _
  $region37: #{siamese_forward.1} parent=0 // pred_fallthru
    _
  // Predicated region
  $region38: #{siamese_forward.1} parent=0 // pred_check
    _
  $region39: #{siamese_forward.1} parent=0 // pred_check_branch
    %39 = sbr.rel (0) target = $region41
  $region40: #{siamese_forward.1} parent=0 // pred_region
    _
  $region41: #{siamese_forward.1} parent=0 // pred_fallthru
    _
  // Predicated region
  $region42: #{siamese_forward.1} parent=0 // pred_check
    _
  $region43: #{siamese_forward.1} parent=0 // pred_check_branch
    %41 = sbr.rel (0) target = $region45
  $region44: #{siamese_forward.1} parent=0 // pred_region
    _
  $region45: #{siamese_forward.1} parent=0 // pred_fallthru
    _
  // Predicated region
  $region46: #{siamese_forward.1} parent=0 // pred_check
    _
  $region47: #{siamese_forward.1} parent=0 // pred_check_branch
    %43 = sbr.rel (0) target = $region49
  $region48: #{siamese_forward.1} parent=0 // pred_region
    _
  $region49: #{siamese_forward.1} parent=0 // pred_fallthru
    _
  // Predicated region
  $region50: #{siamese_forward.1} parent=0 // pred_check
    _
  $region51: #{siamese_forward.1} parent=0 // pred_check_branch
    %45 = sbr.rel (0) target = $region53
  $region52: #{siamese_forward.1} parent=0 // pred_region
    _
  $region53: #{siamese_forward.1} parent=0 // pred_fallthru
    _
  %v47 = vld [vmem:[%s0] sm:$0xff]
  %v48 = vld [vmem:[%s0 + $0x8] sm:$0xff]
  %v49 = vld [vmem:[%s1] sm:$0xf]
  %v50 = vld [vmem:[%s1 + $0x4] sm:$0xf]
  %v51 = vld [vmem:[%s1 + $0x8] sm:$0xf]
  %v52 = vld [vmem:[%s1 + $0xc] sm:$0xf]
  %v53 = vld [vmem:[%s1 + $0x10] sm:$0xf]
  %v54 = vld [vmem:[%s1 + $0x14] sm:$0xf]
  %v55 = vld [vmem:[%s1 + $0x18] sm:$0xf]
  %v56 = vld [vmem:[%s1 + $0x1c] sm:$0xf]
  %v57 = vld [vmem:[%s1 + $0x20] sm:$0xf]
  %v58 = vld [vmem:[%s1 + $0x24] sm:$0xf]
  %v59 = vld [vmem:[%s1 + $0x28] sm:$0xf]
  %v60 = vld [vmem:[%s1 + $0x2c] sm:$0xf]
  %v61 = vld [vmem:[%s1 + $0x30] sm:$0xf]
  %v62 = vld [vmem:[%s1 + $0x34] sm:$0xf]
  %v63 = vld [vmem:[%s1 + $0x38] sm:$0xf]
  %v64 = vld [vmem:[%s1 + $0x3c] sm:$0xf]
  %v65 = vld [vmem:[%s1 + $0x40] sm:$0xf]
  %v66 = vld [vmem:[%s1 + $0x44] sm:$0xf]
  %v67 = vld [vmem:[%s1 + $0x48] sm:$0xf]
  %v68 = vld [vmem:[%s1 + $0x4c] sm:$0xf]
  %v69 = vld [vmem:[%s1 + $0x50] sm:$0xf]
  %v70 = vld [vmem:[%s1 + $0x54] sm:$0xf]
  %v71 = vld [vmem:[%s1 + $0x58] sm:$0xf]
  %v72 = vld [vmem:[%s1 + $0x5c] sm:$0xf]
  %v73 = vld [vmem:[%s1 + $0x60] sm:$0xf]
  %v74 = vld [vmem:[%s1 + $0x64] sm:$0xf]
  %v75 = vld [vmem:[%s1 + $0x68] sm:$0xf]
  %v76 = vld [vmem:[%s1 + $0x6c] sm:$0xf]
  %v77 = vld [vmem:[%s1 + $0x70] sm:$0xf]
  %v78 = vld [vmem:[%s1 + $0x74] sm:$0xf]
  %v79 = vld [vmem:[%s1 + $0x78] sm:$0xf]
  %v80 = vld [vmem:[%s1 + $0x7c] sm:$0xf]
  %v81 = vld [vmem:[%s1 + $0x80] sm:$0xf]
  %v82 = vld [vmem:[%s1 + $0x84] sm:$0xf]
  %v83 = vld [vmem:[%s1 + $0x88] sm:$0xf]
  %v84 = vld [vmem:[%s1 + $0x8c] sm:$0xf]
  %v85 = vld [vmem:[%s1 + $0x90] sm:$0xf]
  %v86 = vld [vmem:[%s1 + $0x94] sm:$0xf]
  %v87 = vld [vmem:[%s1 + $0x98] sm:$0xf]
  %v88 = vld [vmem:[%s1 + $0x9c] sm:$0xf]
  %v89 = vld [vmem:[%s1 + $0xa0] sm:$0xf]
  %v90 = vld [vmem:[%s1 + $0xa4] sm:$0xf]
  %v91 = vld [vmem:[%s1 + $0xa8] sm:$0xf]
  %v92 = vld [vmem:[%s1 + $0xac] sm:$0xf]
  %v93 = vld [vmem:[%s1 + $0xb0] sm:$0xf]
  %v94 = vld [vmem:[%s1 + $0xb4] sm:$0xf]
  %v95 = vld [vmem:[%s1 + $0xb8] sm:$0xf]
  %v96 = vld [vmem:[%s1 + $0xbc] sm:$0xf]
  %v97 = vld [vmem:[%s1 + $0xc0] sm:$0xf]
  %v98 = vld [vmem:[%s1 + $0xc4] sm:$0xf]
  %v99 = vld [vmem:[%s1 + $0xc8] sm:$0xf]
  %v100 = vld [vmem:[%s1 + $0xcc] sm:$0xf]
  %v101 = vld [vmem:[%s1 + $0xd0] sm:$0xf]
  %v102 = vld [vmem:[%s1 + $0xd4] sm:$0xf]
  %v103 = vld [vmem:[%s1 + $0xd8] sm:$0xf]
  %v104 = vld [vmem:[%s1 + $0xdc] sm:$0xf]
  %v105 = vld [vmem:[%s1 + $0xe0] sm:$0xf]
  %v106 = vld [vmem:[%s1 + $0xe4] sm:$0xf]
  %v107 = vld [vmem:[%s1 + $0xe8] sm:$0xf]
  %v108 = vld [vmem:[%s1 + $0xec] sm:$0xf]
  %v109 = vld [vmem:[%s1 + $0xf0] sm:$0x7]
  %v110 = vld [vmem:[%s2] sm:$0x1]
  %v112 = vlaneseq
  %v113 = vshrl.u32 %v112, 7
  %v114 = vsub.s32 0, %v113
  %v115 = vrot.slane %v110, %v114
  %v119 = vunpack.c.l.b16 %v47
  %v120 = vunpack.c.h.b16 %v47
  %v121 = vunpack.c.l.b16 %v48
  %v122 = vunpack.c.h.b16 %v48
  %v123 = vpack.c.b16 %v119, %v119
  %v124 = vpack.c.b16 %v120, %v120
  %v125 = vpack.c.b16 %v121, %v121
  %v126 = vpack.c.b16 %v122, %v122
  %v191 = vunpack.c.l.b16 %v49
  %v192 = vunpack.c.l.b16 %v50
  %v193 = vunpack.c.l.b16 %v51
  %v194 = vunpack.c.l.b16 %v52
  %v195 = vunpack.c.l.b16 %v53
  %v196 = vunpack.c.l.b16 %v54
  %v197 = vunpack.c.l.b16 %v55
  %v198 = vunpack.c.l.b16 %v56
  %v199 = vunpack.c.l.b16 %v57
  %v200 = vunpack.c.l.b16 %v58
  %v201 = vunpack.c.l.b16 %v59
  %v202 = vunpack.c.l.b16 %v60
  %v203 = vunpack.c.l.b16 %v61
  %v204 = vunpack.c.l.b16 %v62
  %v205 = vunpack.c.l.b16 %v63
  %v206 = vunpack.c.l.b16 %v64
  %v207 = vunpack.c.l.b16 %v65
  %v208 = vunpack.c.l.b16 %v66
  %v209 = vunpack.c.l.b16 %v67
  %v210 = vunpack.c.l.b16 %v68
  %v211 = vunpack.c.l.b16 %v69
  %v212 = vunpack.c.l.b16 %v70
  %v213 = vunpack.c.l.b16 %v71
  %v214 = vunpack.c.l.b16 %v72
  %v215 = vunpack.c.l.b16 %v73
  %v216 = vunpack.c.l.b16 %v74
  %v217 = vunpack.c.l.b16 %v75
  %v218 = vunpack.c.l.b16 %v76
  %v219 = vunpack.c.l.b16 %v77
  %v220 = vunpack.c.l.b16 %v78
  %v221 = vunpack.c.l.b16 %v79
  %v222 = vunpack.c.l.b16 %v80
  %v223 = vunpack.c.l.b16 %v81
  %v224 = vunpack.c.l.b16 %v82
  %v225 = vunpack.c.l.b16 %v83
  %v226 = vunpack.c.l.b16 %v84
  %v227 = vunpack.c.l.b16 %v85
  %v228 = vunpack.c.l.b16 %v86
  %v229 = vunpack.c.l.b16 %v87
  %v230 = vunpack.c.l.b16 %v88
  %v231 = vunpack.c.l.b16 %v89
  %v232 = vunpack.c.l.b16 %v90
  %v233 = vunpack.c.l.b16 %v91
  %v234 = vunpack.c.l.b16 %v92
  %v235 = vunpack.c.l.b16 %v93
  %v236 = vunpack.c.l.b16 %v94
  %v237 = vunpack.c.l.b16 %v95
  %v238 = vunpack.c.l.b16 %v96
  %v239 = vunpack.c.l.b16 %v97
  %v240 = vunpack.c.l.b16 %v98
  %v241 = vunpack.c.l.b16 %v99
  %v242 = vunpack.c.l.b16 %v100
  %v243 = vunpack.c.l.b16 %v101
  %v244 = vunpack.c.l.b16 %v102
  %v245 = vunpack.c.l.b16 %v103
  %v246 = vunpack.c.l.b16 %v104
  %v247 = vunpack.c.l.b16 %v105
  %v248 = vunpack.c.l.b16 %v106
  %v249 = vunpack.c.l.b16 %v107
  %v250 = vunpack.c.l.b16 %v108
  %v251 = vunpack.c.l.b16 %v109
  %v252 = vpack.c.b16 %v192, %v191
  %v253 = vpack.c.b16 %v194, %v193
  %v254 = vpack.c.b16 %v196, %v195
  %v255 = vpack.c.b16 %v198, %v197
  %v256 = vpack.c.b16 %v200, %v199
  %v257 = vpack.c.b16 %v202, %v201
  %v258 = vpack.c.b16 %v204, %v203
  %v259 = vpack.c.b16 %v206, %v205
  %v260 = vpack.c.b16 %v208, %v207
  %v261 = vpack.c.b16 %v210, %v209
  %v262 = vpack.c.b16 %v212, %v211
  %v263 = vpack.c.b16 %v214, %v213
  %v264 = vpack.c.b16 %v216, %v215
  %v265 = vpack.c.b16 %v218, %v217
  %v266 = vpack.c.b16 %v220, %v219
  %v267 = vpack.c.b16 %v222, %v221
  %v268 = vpack.c.b16 %v224, %v223
  %v269 = vpack.c.b16 %v226, %v225
  %v270 = vpack.c.b16 %v228, %v227
  %v271 = vpack.c.b16 %v230, %v229
  %v272 = vpack.c.b16 %v232, %v231
  %v273 = vpack.c.b16 %v234, %v233
  %v274 = vpack.c.b16 %v236, %v235
  %v275 = vpack.c.b16 %v238, %v237
  %v276 = vpack.c.b16 %v240, %v239
  %v277 = vpack.c.b16 %v242, %v241
  %v278 = vpack.c.b16 %v244, %v243
  %v279 = vpack.c.b16 %v246, %v245
  %v280 = vpack.c.b16 %v248, %v247
  %v281 = vpack.c.b16 %v250, %v249
  %v282 = vpack.c.b16 %v251, %v251
  %vm313 = vcmask 834560
  %v315 = vsel %vm313, %v126, 0
  %vm317 = vcmask 1042432
  %v319 = vsel %vm317, %v282, 0
  %321 = vmatprep.subr.bf16.mxu0 0
  %322 = vmatpush1.bf16.msra.mxu0 %v252
  %323 = vmatprep.subr.bf16.mxu0 0
  %324 = vmatpush1.bf16.msra.mxu0 %v253
  %325 = vmatprep.subr.bf16.mxu0 0
  %326 = vmatpush1.bf16.msra.mxu0 %v254
  %327 = vmatprep.subr.bf16.mxu0 0
  %328 = vmatpush1.bf16.msra.mxu0 %v255
  %329 = vmatprep.subr.bf16.mxu0 0
  %330 = vmatpush1.bf16.msra.mxu0 %v256
  %331 = vmatprep.subr.bf16.mxu0 0
  %332 = vmatpush1.bf16.msra.mxu0 %v257
  %333 = vmatprep.subr.bf16.mxu0 0
  %334 = vmatpush1.bf16.msra.mxu0 %v258
  %335 = vmatprep.subr.bf16.mxu0 0
  %336 = vmatpush1.bf16.msra.mxu0 %v259
  %337 = vmatprep.subr.bf16.mxu0 0
  %338 = vmatpush1.bf16.msra.mxu0 %v260
  %339 = vmatprep.subr.bf16.mxu0 0
  %340 = vmatpush1.bf16.msra.mxu0 %v261
  %341 = vmatprep.subr.bf16.mxu0 0
  %342 = vmatpush1.bf16.msra.mxu0 %v262
  %343 = vmatprep.subr.bf16.mxu0 0
  %344 = vmatpush1.bf16.msra.mxu0 %v263
  %345 = vmatprep.subr.bf16.mxu0 0
  %346 = vmatpush1.bf16.msra.mxu0 %v264
  %347 = vmatprep.subr.bf16.mxu0 0
  %348 = vmatpush1.bf16.msra.mxu0 %v265
  %349 = vmatprep.subr.bf16.mxu0 0
  %350 = vmatpush1.bf16.msra.mxu0 %v266
  %351 = vmatprep.subr.bf16.mxu0 0
  %352 = vmatpush1.bf16.msra.mxu0 %v267
  %353 = vmatprep.mubr.bf16.mxu0 %v124
  %354 = vmatmul.mubr.bf16.gmra.mrb[0].mxu0 %v123
  %v355 = vpop.f32.mrb[0].mxu0
  %v356 = vadd.f32 %v115, %v355
  %v357 = vpop.f32.mrb[0].mxu0
  %v358 = vpop.f32.mrb[0].mxu0
  %v359 = vpop.f32.mrb[0].mxu0
  %360 = vdwg.mxu0
  %361 = vmatprep.subr.bf16.mxu0 0
  %362 = vmatpush1.bf16.msra.mxu0 %v268
  %363 = vmatprep.subr.bf16.mxu0 0
  %364 = vmatpush1.bf16.msra.mxu0 %v269
  %365 = vmatprep.subr.bf16.mxu0 0
  %366 = vmatpush1.bf16.msra.mxu0 %v270
  %367 = vmatprep.subr.bf16.mxu0 0
  %368 = vmatpush1.bf16.msra.mxu0 %v271
  %369 = vmatprep.subr.bf16.mxu0 0
  %370 = vmatpush1.bf16.msra.mxu0 %v272
  %371 = vmatprep.subr.bf16.mxu0 0
  %372 = vmatpush1.bf16.msra.mxu0 %v273
  %373 = vmatprep.subr.bf16.mxu0 0
  %374 = vmatpush1.bf16.msra.mxu0 %v274
  %375 = vmatprep.subr.bf16.mxu0 0
  %376 = vmatpush1.bf16.msra.mxu0 %v275
  %377 = vmatprep.subr.bf16.mxu0 0
  %378 = vmatpush1.bf16.msra.mxu0 %v276
  %379 = vmatprep.subr.bf16.mxu0 0
  %380 = vmatpush1.bf16.msra.mxu0 %v277
  %381 = vmatprep.subr.bf16.mxu0 0
  %382 = vmatpush1.bf16.msra.mxu0 %v278
  %383 = vmatprep.subr.bf16.mxu0 0
  %384 = vmatpush1.bf16.msra.mxu0 %v279
  %385 = vmatprep.subr.bf16.mxu0 0
  %386 = vmatpush1.bf16.msra.mxu0 %v280
  %387 = vmatprep.subr.bf16.mxu0 0
  %388 = vmatpush1.bf16.msra.mxu0 %v281
  %389 = vmatprep.subr.bf16.mxu0 0
  %390 = vmatpush1.bf16.msra.mxu0 %v319
  %391 = vmatprep.subr.bf16.mxu0 0
  %392 = vmatpush1.bf16.msra.mxu0 0
  %393 = vmatprep.mubr.bf16.mxu0 %v315
  %394 = vmatmul.mubr.bf16.gmra.mrb[0].mxu0 %v125
  %v395 = vpop.f32.mrb[0].mxu0
  %v396 = vadd.f32 %v356, %v395
  %v397 = vpop.f32.mrb[0].mxu0
  %v398 = vpop.f32.mrb[0].mxu0
  %v399 = vpop.f32.mrb[0].mxu0
  %400 = vdwg.mxu0
  %v401 = vmax.f32 %v396, 0.0
  %v402 = vpack.c.bf16 %v401, %v401
  %v403 = vld [vmem:[%s3] sm:$0xf]
  %v404 = vld [vmem:[%s3 + $0x4] sm:$0xf]
  %v405 = vld [vmem:[%s3 + $0x8] sm:$0xf]
  %v406 = vld [vmem:[%s3 + $0xc] sm:$0xf]
  %v407 = vld [vmem:[%s3 + $0x10] sm:$0xf]
  %v408 = vld [vmem:[%s3 + $0x14] sm:$0xf]
  %v409 = vld [vmem:[%s3 + $0x18] sm:$0xf]
  %v410 = vld [vmem:[%s3 + $0x1c] sm:$0xf]
  %v411 = vld [vmem:[%s3 + $0x20] sm:$0xf]
  %v412 = vld [vmem:[%s3 + $0x24] sm:$0xf]
  %v413 = vld [vmem:[%s3 + $0x28] sm:$0xf]
  %v414 = vld [vmem:[%s3 + $0x2c] sm:$0xf]
  %v415 = vld [vmem:[%s3 + $0x30] sm:$0x3]
  %v416 = vld [vmem:[%s4] sm:$0x1]
  %v418 = vlaneseq
  %v419 = vshrl.u32 %v418, 7
  %v420 = vsub.s32 0, %v419
  %v421 = vrot.slane %v416, %v420
  %v436 = vunpack.c.l.b16 %v403
  %v437 = vunpack.c.l.b16 %v404
  %v438 = vunpack.c.l.b16 %v405
  %v439 = vunpack.c.l.b16 %v406
  %v440 = vunpack.c.l.b16 %v407
  %v441 = vunpack.c.l.b16 %v408
  %v442 = vunpack.c.l.b16 %v409
  %v443 = vunpack.c.l.b16 %v410
  %v444 = vunpack.c.l.b16 %v411
  %v445 = vunpack.c.l.b16 %v412
  %v446 = vunpack.c.l.b16 %v413
  %v447 = vunpack.c.l.b16 %v414
  %v448 = vunpack.c.l.b16 %v415
  %v449 = vpack.c.b16 %v437, %v436
  %v450 = vpack.c.b16 %v439, %v438
  %v451 = vpack.c.b16 %v441, %v440
  %v452 = vpack.c.b16 %v443, %v442
  %v453 = vpack.c.b16 %v445, %v444
  %v454 = vpack.c.b16 %v447, %v446
  %v455 = vpack.c.b16 %v448, %v448
  %vm462 = vcmask 818176
  %v464 = vsel %vm462, %v402, 0
  %vm466 = vcmask 1041408
  %v468 = vsel %vm466, %v455, 0
  %470 = vmatprep.subr.bf16.mxu0 0
  %471 = vmatpush1.bf16.msra.mxu0 %v449
  %472 = vmatprep.subr.bf16.mxu0 0
  %473 = vmatpush1.bf16.msra.mxu0 %v450
  %474 = vmatprep.subr.bf16.mxu0 0
  %475 = vmatpush1.bf16.msra.mxu0 %v451
  %476 = vmatprep.subr.bf16.mxu0 0
  %477 = vmatpush1.bf16.msra.mxu0 %v452
  %478 = vmatprep.subr.bf16.mxu0 0
  %479 = vmatpush1.bf16.msra.mxu0 %v453
  %480 = vmatprep.subr.bf16.mxu0 0
  %481 = vmatpush1.bf16.msra.mxu0 %v454
  %482 = vmatprep.subr.bf16.mxu0 0
  %483 = vmatpush1.bf16.msra.mxu0 %v468
  %484 = vmatprep.subr.bf16.mxu0 0
  %485 = vmatpush1.bf16.msra.mxu0 0
  %486 = vmatprep.subr.bf16.mxu0 0
  %487 = vmatpush1.bf16.msra.mxu0 0
  %488 = vmatprep.subr.bf16.mxu0 0
  %489 = vmatpush1.bf16.msra.mxu0 0
  %490 = vmatprep.subr.bf16.mxu0 0
  %491 = vmatpush1.bf16.msra.mxu0 0
  %492 = vmatprep.subr.bf16.mxu0 0
  %493 = vmatpush1.bf16.msra.mxu0 0
  %494 = vmatprep.subr.bf16.mxu0 0
  %495 = vmatpush1.bf16.msra.mxu0 0
  %496 = vmatprep.subr.bf16.mxu0 0
  %497 = vmatpush1.bf16.msra.mxu0 0
  %498 = vmatprep.subr.bf16.mxu0 0
  %499 = vmatpush1.bf16.msra.mxu0 0
  %500 = vmatprep.subr.bf16.mxu0 0
  %501 = vmatpush1.bf16.msra.mxu0 0
  %502 = vmatprep.mubr.bf16.mxu0 0
  %503 = vmatmul.mubr.bf16.gmra.mrb[0].mxu0 %v464
  %v504 = vpop.f32.mrb[0].mxu0
  %v505 = vadd.f32 %v421, %v504
  %v506 = vpop.f32.mrb[0].mxu0
  %v507 = vpop.f32.mrb[0].mxu0
  %v508 = vpop.f32.mrb[0].mxu0
  %509 = vdwg.mxu0
  %v510 = vmax.f32 %v505, 0.0
  %v511 = vpack.c.bf16 %v510, %v510
  %v512 = vld [vmem:[%s5] sm:$0xf]
  %v513 = vld [vmem:[%s5 + $0x4] sm:$0xf]
  %v514 = vld [vmem:[%s5 + $0x8] sm:$0xf]
  %v515 = vld [vmem:[%s5 + $0xc] sm:$0xf]
  %v516 = vld [vmem:[%s5 + $0x10] sm:$0xf]
  %v517 = vld [vmem:[%s5 + $0x14] sm:$0xf]
  %v518 = vld [vmem:[%s5 + $0x18] sm:$0xf]
  %v519 = vld [vmem:[%s5 + $0x1c] sm:$0xf]
  %v520 = vld [vmem:[%s5 + $0x20] sm:$0xf]
  %v521 = vld [vmem:[%s5 + $0x24] sm:$0xf]
  %v522 = vld [vmem:[%s5 + $0x28] sm:$0xf]
  %v523 = vld [vmem:[%s5 + $0x2c] sm:$0xf]
  %v524 = vld [vmem:[%s5 + $0x30] sm:$0x3]
  %v525 = vld [vmem:[%s6] sm:$0x1]
  %v527 = vlaneseq
  %v528 = vshrl.u32 %v527, 7
  %v529 = vsub.s32 0, %v528
  %v530 = vrot.slane %v525, %v529
  %v545 = vunpack.c.l.b16 %v512
  %v546 = vunpack.c.l.b16 %v513
  %v547 = vunpack.c.l.b16 %v514
  %v548 = vunpack.c.l.b16 %v515
  %v549 = vunpack.c.l.b16 %v516
  %v550 = vunpack.c.l.b16 %v517
  %v551 = vunpack.c.l.b16 %v518
  %v552 = vunpack.c.l.b16 %v519
  %v553 = vunpack.c.l.b16 %v520
  %v554 = vunpack.c.l.b16 %v521
  %v555 = vunpack.c.l.b16 %v522
  %v556 = vunpack.c.l.b16 %v523
  %v557 = vunpack.c.l.b16 %v524
  %v558 = vpack.c.b16 %v546, %v545
  %v559 = vpack.c.b16 %v548, %v547
  %v560 = vpack.c.b16 %v550, %v549
  %v561 = vpack.c.b16 %v552, %v551
  %v562 = vpack.c.b16 %v554, %v553
  %v563 = vpack.c.b16 %v556, %v555
  %v564 = vpack.c.b16 %v557, %v557
  %v572 = vsel %vm462, %v511, 0
  %v575 = vsel %vm466, %v564, 0
  %577 = vmatprep.subr.bf16.mxu0 0
  %578 = vmatpush1.bf16.msra.mxu0 %v558
  %579 = vmatprep.subr.bf16.mxu0 0
  %580 = vmatpush1.bf16.msra.mxu0 %v559
  %581 = vmatprep.subr.bf16.mxu0 0
  %582 = vmatpush1.bf16.msra.mxu0 %v560
  %583 = vmatprep.subr.bf16.mxu0 0
  %584 = vmatpush1.bf16.msra.mxu0 %v561
  %585 = vmatprep.subr.bf16.mxu0 0
  %586 = vmatpush1.bf16.msra.mxu0 %v562
  %587 = vmatprep.subr.bf16.mxu0 0
  %588 = vmatpush1.bf16.msra.mxu0 %v563
  %589 = vmatprep.subr.bf16.mxu0 0
  %590 = vmatpush1.bf16.msra.mxu0 %v575
  %591 = vmatprep.subr.bf16.mxu0 0
  %592 = vmatpush1.bf16.msra.mxu0 0
  %593 = vmatprep.subr.bf16.mxu0 0
  %594 = vmatpush1.bf16.msra.mxu0 0
  %595 = vmatprep.subr.bf16.mxu0 0
  %596 = vmatpush1.bf16.msra.mxu0 0
  %597 = vmatprep.subr.bf16.mxu0 0
  %598 = vmatpush1.bf16.msra.mxu0 0
  %599 = vmatprep.subr.bf16.mxu0 0
  %600 = vmatpush1.bf16.msra.mxu0 0
  %601 = vmatprep.subr.bf16.mxu0 0
  %602 = vmatpush1.bf16.msra.mxu0 0
  %603 = vmatprep.subr.bf16.mxu0 0
  %604 = vmatpush1.bf16.msra.mxu0 0
  %605 = vmatprep.subr.bf16.mxu0 0
  %606 = vmatpush1.bf16.msra.mxu0 0
  %607 = vmatprep.subr.bf16.mxu0 0
  %608 = vmatpush1.bf16.msra.mxu0 0
  %609 = vmatprep.mubr.bf16.mxu0 0
  %610 = vmatmul.mubr.bf16.gmra.mrb[0].mxu0 %v572
  %v611 = vpop.f32.mrb[0].mxu0
  %v612 = vadd.f32 %v530, %v611
  %v613 = vpop.f32.mrb[0].mxu0
  %v614 = vpop.f32.mrb[0].mxu0
  %v615 = vpop.f32.mrb[0].mxu0
  %616 = vdwg.mxu0
  %v617 = vmax.f32 %v612, 0.0
  %v618 = vpack.c.bf16 %v617, %v617
  %v619 = vld [vmem:[%s7] sm:$0xf]
  %v620 = vld [vmem:[%s7 + $0x4] sm:$0xf]
  %v621 = vld [vmem:[%s7 + $0x8] sm:$0xf]
  %v622 = vld [vmem:[%s7 + $0xc] sm:$0xf]
  %v623 = vld [vmem:[%s7 + $0x10] sm:$0xf]
  %v624 = vld [vmem:[%s7 + $0x14] sm:$0xf]
  %v625 = vld [vmem:[%s7 + $0x18] sm:$0xf]
  %v626 = vld [vmem:[%s7 + $0x1c] sm:$0xf]
  %v627 = vld [vmem:[%s7 + $0x20] sm:$0xf]
  %v628 = vld [vmem:[%s7 + $0x24] sm:$0x3]
  %v629 = vld [vmem:[%s8] sm:$0x1]
  %v631 = vlaneseq
  %v632 = vshrl.u32 %v631, 7
  %v633 = vsub.s32 0, %v632
  %v634 = vrot.slane %v629, %v633
  %v646 = vunpack.c.l.b16 %v619
  %v647 = vunpack.c.l.b16 %v620
  %v648 = vunpack.c.l.b16 %v621
  %v649 = vunpack.c.l.b16 %v622
  %v650 = vunpack.c.l.b16 %v623
  %v651 = vunpack.c.l.b16 %v624
  %v652 = vunpack.c.l.b16 %v625
  %v653 = vunpack.c.l.b16 %v626
  %v654 = vunpack.c.l.b16 %v627
  %v655 = vunpack.c.l.b16 %v628
  %v656 = vpack.c.b16 %v647, %v646
  %v657 = vpack.c.b16 %v649, %v648
  %v658 = vpack.c.b16 %v651, %v650
  %v659 = vpack.c.b16 %v653, %v652
  %v660 = vpack.c.b16 %v655, %v654
  %vm665 = vcmask 613376
  %v667 = vsel %vm665, %v618, 0
  %vm669 = vcmask 1044480
  %vm670 = vcmask 1045504
  %v671 = vsel %vm669, 4294967295, 65535
  %v672 = vsel %vm670, %v671, 0
  %v674 = vand.u32 %v660, %v672
  %676 = vmatprep.subr.bf16.mxu0 0
  %677 = vmatpush1.bf16.msra.mxu0 %v656
  %678 = vmatprep.subr.bf16.mxu0 0
  %679 = vmatpush1.bf16.msra.mxu0 %v657
  %680 = vmatprep.subr.bf16.mxu0 0
  %681 = vmatpush1.bf16.msra.mxu0 %v658
  %682 = vmatprep.subr.bf16.mxu0 0
  %683 = vmatpush1.bf16.msra.mxu0 %v659
  %684 = vmatprep.subr.bf16.mxu0 0
  %685 = vmatpush1.bf16.msra.mxu0 %v674
  %686 = vmatprep.subr.bf16.mxu0 0
  %687 = vmatpush1.bf16.msra.mxu0 0
  %688 = vmatprep.subr.bf16.mxu0 0
  %689 = vmatpush1.bf16.msra.mxu0 0
  %690 = vmatprep.subr.bf16.mxu0 0
  %691 = vmatpush1.bf16.msra.mxu0 0
  %692 = vmatprep.subr.bf16.mxu0 0
  %693 = vmatpush1.bf16.msra.mxu0 0
  %694 = vmatprep.subr.bf16.mxu0 0
  %695 = vmatpush1.bf16.msra.mxu0 0
  %696 = vmatprep.subr.bf16.mxu0 0
  %697 = vmatpush1.bf16.msra.mxu0 0
  %698 = vmatprep.subr.bf16.mxu0 0
  %699 = vmatpush1.bf16.msra.mxu0 0
  %700 = vmatprep.subr.bf16.mxu0 0
  %701 = vmatpush1.bf16.msra.mxu0 0
  %702 = vmatprep.subr.bf16.mxu0 0
  %703 = vmatpush1.bf16.msra.mxu0 0
  %704 = vmatprep.subr.bf16.mxu0 0
  %705 = vmatpush1.bf16.msra.mxu0 0
  %706 = vmatprep.subr.bf16.mxu0 0
  %707 = vmatpush1.bf16.msra.mxu0 0
  %708 = vmatprep.mubr.bf16.mxu0 0
  %709 = vmatmul.mubr.bf16.gmra.mrb[0].mxu0 %v667
  %v710 = vpop.f32.mrb[0].mxu0
  %v711 = vadd.f32 %v634, %v710
  %v712 = vpop.f32.mrb[0].mxu0
  %v713 = vpop.f32.mrb[0].mxu0
  %v714 = vpop.f32.mrb[0].mxu0
  %715 = vdwg.mxu0
  %v716 = vmax.f32 %v711, 0.0
  %v717 = vpack.c.bf16 %v716, %v716
  %v718 = vld [vmem:[%s9] sm:$0xf]
  %v719 = vld [vmem:[%s9 + $0x4] sm:$0xf]
  %v720 = vld [vmem:[%s9 + $0x8] sm:$0xf]
  %v721 = vld [vmem:[%s9 + $0xc] sm:$0xf]
  %v722 = vld [vmem:[%s9 + $0x10] sm:$0xf]
  %v723 = vld [vmem:[%s9 + $0x14] sm:$0xf]
  %v724 = vld [vmem:[%s9 + $0x18] sm:$0x1]
  %v725 = vld [vmem:[%s10] sm:$0x1]
  %v727 = vlaneseq
  %v728 = vshrl.u32 %v727, 7
  %v729 = vsub.s32 0, %v728
  %v730 = vrot.slane %v725, %v729
  %v739 = vunpack.c.l.b16 %v718
  %v740 = vunpack.c.l.b16 %v719
  %v741 = vunpack.c.l.b16 %v720
  %v742 = vunpack.c.l.b16 %v721
  %v743 = vunpack.c.l.b16 %v722
  %v744 = vunpack.c.l.b16 %v723
  %v745 = vunpack.c.l.b16 %v724
  %v746 = vpack.c.b16 %v740, %v739
  %v747 = vpack.c.b16 %v742, %v741
  %v748 = vpack.c.b16 %v744, %v743
  %v749 = vpack.c.b16 %v745, %v745
  %vm753 = vcmask 408576
  %v755 = vsel %vm753, %v717, 0
  %vm757 = vcmask 1040384
  %v759 = vsel %vm757, %v749, 0
  %761 = vmatprep.subr.bf16.mxu0 0
  %762 = vmatpush1.bf16.msra.mxu0 %v746
  %763 = vmatprep.subr.bf16.mxu0 0
  %764 = vmatpush1.bf16.msra.mxu0 %v747
  %765 = vmatprep.subr.bf16.mxu0 0
  %766 = vmatpush1.bf16.msra.mxu0 %v748
  %767 = vmatprep.subr.bf16.mxu0 0
  %768 = vmatpush1.bf16.msra.mxu0 %v759
  %769 = vmatprep.subr.bf16.mxu0 0
  %770 = vmatpush1.bf16.msra.mxu0 0
  %771 = vmatprep.subr.bf16.mxu0 0
  %772 = vmatpush1.bf16.msra.mxu0 0
  %773 = vmatprep.subr.bf16.mxu0 0
  %774 = vmatpush1.bf16.msra.mxu0 0
  %775 = vmatprep.subr.bf16.mxu0 0
  %776 = vmatpush1.bf16.msra.mxu0 0
  %777 = vmatprep.subr.bf16.mxu0 0
  %778 = vmatpush1.bf16.msra.mxu0 0
  %779 = vmatprep.subr.bf16.mxu0 0
  %780 = vmatpush1.bf16.msra.mxu0 0
  %781 = vmatprep.subr.bf16.mxu0 0
  %782 = vmatpush1.bf16.msra.mxu0 0
  %783 = vmatprep.subr.bf16.mxu0 0
  %784 = vmatpush1.bf16.msra.mxu0 0
  %785 = vmatprep.subr.bf16.mxu0 0
  %786 = vmatpush1.bf16.msra.mxu0 0
  %787 = vmatprep.subr.bf16.mxu0 0
  %788 = vmatpush1.bf16.msra.mxu0 0
  %789 = vmatprep.subr.bf16.mxu0 0
  %790 = vmatpush1.bf16.msra.mxu0 0
  %791 = vmatprep.subr.bf16.mxu0 0
  %792 = vmatpush1.bf16.msra.mxu0 0
  %793 = vmatprep.mubr.bf16.mxu0 0
  %794 = vmatmul.mubr.bf16.gmra.mrb[0].mxu0 %v755
  %v795 = vpop.f32.mrb[0].mxu0
  %v796 = vadd.f32 %v730, %v795
  %v797 = vpop.f32.mrb[0].mxu0
  %v798 = vpop.f32.mrb[0].mxu0
  %v799 = vpop.f32.mrb[0].mxu0
  %800 = vdwg.mxu0
  %v801 = vmax.f32 %v796, 0.0
  %v802 = vld [vmem:[%s11] sm:$0x1]
  %v804 = vlaneseq
  %v805 = vshrl.u32 %v804, 7
  %v806 = vsub.s32 0, %v805
  %v807 = vrot.slane %v802, %v806
  %v809 = vmul.f32 %v801, %v807
  %vm810 = vcmask 203776
  %v811 = vsel %vm810, %v809, 0.0
  %812 = vadd.xlane.f32.xlu0 %v811
  %v813 = vpop.xlane.xlu0 %812
  %v814 = vld [vmem:[#allocation2] sm:$0x1]
  %v816 = vlaneseq
  %v817 = vshrl.u32 %v816, 7
  %v818 = vsub.s32 0, %v817
  %v819 = vrot.slane %v814, %v818
  %v821 = vadd.f32 %v813, %v819
  %vm822 = vcmask 7168
  %823 = vst.msk [vmem:[%s13] sm:$0xff] %vm822, %v821
  // Predicated region
  $region54: #{siamese_forward.1} parent=0 // pred_check
    _
  $region55: #{siamese_forward.1} parent=0 // pred_check_branch
    %825 = sbr.rel (0) target = $region57
  $region56: #{siamese_forward.1} parent=0 // pred_region
    _
  $region57: #{siamese_forward.1} parent=0 // pred_fallthru
    _
  // Predicated region
  $region58: #{siamese_forward.1} parent=0 // pred_check
    _
  $region59: #{siamese_forward.1} parent=0 // pred_check_branch
    %827 = sbr.rel (0) target = $region61
  $region60: #{siamese_forward.1} parent=0 // pred_region
    _
  $region61: #{siamese_forward.1} parent=0 // pred_fallthru
    _

</llo_original>
